<compile_context>
chip_gen: v6e
topology: v6e:2x2x1
jax: 0.10.0
libtpu: 0.0.40
codegen_flags: <defaults>
</compile_context>

<pallas_src>
import functools

import jax
import jax.numpy as jnp
from jax import lax
from jax.experimental import pallas as pl
from jax.experimental.pallas import tpu as pltpu

_LANES = 128
_SUBLANES = 8
_TILE_ROWS = 2048   # (2048, 128) f32 = 1 MiB / input block; 4 MiB double-buffered.
_UNROLL = 16        # inner fori_loop unroll (amortizes scalar loop overhead).


def _cdiv(a, b):
    return -(-a // b)


def _rsquare_kernel(shift_ref, pred_ref, true_ref, out_ref,
                    acc_y, acc_y2, acc_res, *, full_blocks, has_dup):
    """Accumulates per-lane partial sums for one (tile_r, 128) row block.

    Grid: (split p ["parallel"], row-block k ["arbitrary" / reduction]).
    """
    k = pl.program_id(1)

    @pl.when(k == 0)
    def _init():
        acc_y[...] = jnp.zeros_like(acc_y)
        acc_y2[...] = jnp.zeros_like(acc_y2)
        acc_res[...] = jnp.zeros_like(acc_res)

    def _accumulate():
        c = shift_ref[0]                                   # SMEM scalar (one sld)
        n_chunks = true_ref.shape[0] // _SUBLANES

        def body(i, carry):
            ay, ay2, ar = carry
            r0 = pl.multiple_of(i * _SUBLANES, _SUBLANES)
            yt = true_ref[pl.ds(r0, _SUBLANES), :].astype(jnp.float32)
            yp = pred_ref[pl.ds(r0, _SUBLANES), :].astype(jnp.float32)
            yc = yt - c
            d = yt - yp
            return ay + yc, ay2 + yc * yc, ar + d * d

        init = (acc_y[...], acc_y2[...], acc_res[...])
        ay, ay2, ar = lax.fori_loop(0, n_chunks, body, init,
                                    unroll=min(_UNROLL, n_chunks))
        acc_y[...] = ay
        acc_y2[...] = ay2
        acc_res[...] = ar

    if has_dup:
        # Rectangular grid covers one more block than exists; the clamped
        # index_map re-fetched a valid block -- just skip accumulating it.
        block_idx = pl.program_id(0) * pl.num_programs(1) + pl.program_id(1)
        pl.when(block_idx < full_blocks)(_accumulate)
    else:
        _accumulate()

    @pl.when(k == pl.num_programs(1) - 1)
    def _finalize():
        # Lane-dense, unmasked (24, 128) store; cross-lane reduce happens in
        # the jnp wrapper.
        out_ref[0:_SUBLANES, :] = acc_y[...]
        out_ref[_SUBLANES:2 * _SUBLANES, :] = acc_y2[...]
        out_ref[2 * _SUBLANES:3 * _SUBLANES, :] = acc_res[...]


def rsquare(y_pred, y_true, is_loss=True):
    """R^2 loss matching the PyTorch RSquare.forward. Returns a scalar f32."""
    assert y_pred.shape == y_true.shape, "y_pred / y_true shape mismatch"
    n = int(y_true.size)
    assert n > 0

    pred_flat = jnp.ravel(y_pred)
    true_flat = jnp.ravel(y_true)

    # Shift for a numerically-stable one-pass variance:
    #   ss_tot = sum((y-c)^2) - (sum(y-c))^2 / n   (shift-invariant identity)
    # c ~= mean of a small prefix avoids cancellation when |mean| >> std.
    c = jnp.mean(true_flat[: min(n, _LANES)].astype(jnp.float32))

    rows = _cdiv(n, _LANES)                 # rows of the lane-dense (rows, 128) view
    n_pad = rows * _LANES - n               # 0..127 zeros appended only if ragged
    tile_r = min(_TILE_ROWS, max(_SUBLANES, (rows // _SUBLANES) * _SUBLANES))
    full_blocks = rows // tile_r

    if full_blocks == 0:
        # Tiny input (< 8 full rows): plain jnp is already optimal.
        yt = true_flat.astype(jnp.float32)
        yp = pred_flat.astype(jnp.float32)
        yc = yt - c
        s1 = jnp.sum(yc)
        s2 = jnp.sum(yc * yc)
        ss_res = jnp.sum((yt - yp) ** 2)
        n_pad = 0
    else:
        if n_pad:
            # TODO(synk): the lane-pad copy for non-multiple-of-128 sizes could
            # be removed with a manual 1-D DMA tail path; multiples of 128 (the
            # common case) take the zero-copy bitcast reshape below.
            pred_flat = jnp.pad(pred_flat, (0, n_pad))
            true_flat = jnp.pad(true_flat, (0, n_pad))
        pred2d = pred_flat.reshape(rows, _LANES)   # bitcast when n_pad == 0
        true2d = true_flat.reshape(rows, _LANES)

        # 2-way split of the row-block range -> megacore / v7x 2-TC sharding via
        # the "parallel" leading grid axis (harmless no-op on 1-TC chips).
        num_splits = 2 if full_blocks >= 2 else 1
        bps = _cdiv(full_blocks, num_splits)
        has_dup = num_splits * bps > full_blocks

        if has_dup:
            idx_map = lambda p, k: (jnp.minimum(p * bps + k, full_blocks - 1), 0)
        else:
            idx_map = lambda p, k: (p * bps + k, 0)

        kernel = functools.partial(_rsquare_kernel,
                                   full_blocks=full_blocks, has_dup=has_dup)
        bulk_elems = full_blocks * tile_r * _LANES
        itemsize = true2d.dtype.itemsize

        partials = pl.pallas_call(
            kernel,
            out_shape=jax.ShapeDtypeStruct(
                (num_splits * 3 * _SUBLANES, _LANES), jnp.float32),
            grid=(num_splits, bps),
            in_specs=[
                pl.BlockSpec(memory_space=pltpu.MemorySpace.SMEM),   # shift (1,)
                pl.BlockSpec((tile_r, _LANES), idx_map),             # y_pred
                pl.BlockSpec((tile_r, _LANES), idx_map),             # y_true
            ],
            out_specs=pl.BlockSpec((3 * _SUBLANES, _LANES), lambda p, k: (p, 0)),
            scratch_shapes=[pltpu.VMEM((_SUBLANES, _LANES), jnp.float32)] * 3,
            compiler_params=pltpu.CompilerParams(
                dimension_semantics=("parallel", "arbitrary")),
            cost_estimate=pl.CostEstimate(
                flops=7 * bulk_elems,
                transcendentals=0,
                bytes_accessed=2 * bulk_elems * itemsize
                + num_splits * 3 * _SUBLANES * _LANES * 4),
        )(jnp.reshape(c, (1,)), pred2d, true2d)

        parts = partials.reshape(num_splits, 3, _SUBLANES, _LANES)
        s1 = jnp.sum(parts[:, 0])
        s2 = jnp.sum(parts[:, 1])
        ss_res = jnp.sum(parts[:, 2])

        # Rows that don't fill a whole (tile_r, 128) block: bounded (< 1 MiB)
        # jnp tail instead of padding the whole array to the grid capacity.
        bulk_rows = full_blocks * tile_r
        tail_rows = rows - bulk_rows
        if tail_rows:
            yt_t = true2d[bulk_rows:].astype(jnp.float32)
            yp_t = pred2d[bulk_rows:].astype(jnp.float32)
            yc_t = yt_t - c
            s1 = s1 + jnp.sum(yc_t)
            s2 = s2 + jnp.sum(yc_t * yc_t)
            ss_res = ss_res + jnp.sum((yt_t - yp_t) ** 2)

    if n_pad:
        # Remove the exact contribution of the appended zeros (yc = -c each).
        s1 = s1 + jnp.float32(n_pad) * c
        s2 = s2 - jnp.float32(n_pad) * (c * c)

    n_f = jnp.float32(n)
    ss_tot = s2 - (s1 * s1) / n_f
    ratio = ss_res / jnp.maximum(ss_tot, jnp.float32(1e-8))
    return ratio if is_loss else jnp.float32(1.0) - ratio


def _rsquare_ref(y_pred, y_true, is_loss=True):
    y_true = y_true.astype(jnp.float32)
    y_pred = y_pred.astype(jnp.float32)
    y_mean = jnp.mean(y_true)
    ss_tot = jnp.sum((y_true - y_mean) ** 2)
    ss_res = jnp.sum((y_true - y_pred) ** 2)
    r = ss_res / jnp.maximum(ss_tot, 1e-8)
    return r if is_loss else 1.0 - r


def _check(y_pred, y_true):
    loss = rsquare(y_pred, y_true, is_loss=True)
    score = rsquare(y_pred, y_true, is_loss=False)
    jax.block_until_ready((loss, score))
    ref_loss = _rsquare_ref(y_pred, y_true, is_loss=True)
    ref_score = _rsquare_ref(y_pred, y_true, is_loss=False)
    assert jnp.allclose(loss, ref_loss, rtol=1e-4, atol=1e-5), (loss, ref_loss)
    assert jnp.allclose(score, ref_score, rtol=1e-4, atol=1e-5), (score, ref_score)


if __name__ == "__main__":
    key = jax.random.PRNGKey(0)
    k1, k2, k3, k4, k5, k6, k7, k8 = jax.random.split(key, 8)

    # Primary NCHW-style example (op is layout-agnostic: full-tensor reduction).
    y_true = jax.random.normal(k1, (2, 4, 16, 16), dtype=jnp.float32)
    y_pred = y_true + 0.1 * jax.random.normal(k2, (2, 4, 16, 16), dtype=jnp.float32)
    _check(y_pred, y_true)

    # Ragged size (not a multiple of 128): zero-pad + exact correction + jnp tail.
    y_true_r = 2.0 + jax.random.normal(k3, (3, 5, 7, 11), dtype=jnp.float32)
    y_pred_r = y_true_r + 0.2 * jax.random.normal(k4, (3, 5, 7, 11), dtype=jnp.float32)
    _check(y_pred_r, y_true_r)

    # Larger nonzero-mean case: multi-block pipeline + 2-way "parallel" split.
    y_true_l = 3.0 + 0.5 * jax.random.normal(k5, (2, 8, 128, 256), dtype=jnp.float32)
    y_pred_l = y_true_l + 0.1 * jax.random.normal(k6, (2, 8, 128, 256), dtype=jnp.float32)
    _check(y_pred_l, y_true_l)

    # Odd block count + row tail: exercises the clamped/skipped duplicate block
    # and the wrapper-side tail path.
    y_true_o = 1.0 + jax.random.normal(k7, (3, 2056, 128), dtype=jnp.float32)
    y_pred_o = y_true_o + 0.3 * jax.random.normal(k8, (3, 2056, 128), dtype=jnp.float32)
    _check(y_pred_o, y_true_o)

    print("KERNEL_OK")
</pallas_src>

<mosaic_0001>
module attributes {stable_mosaic.version = 11 : i64} {
  func.func @_rsquare_kernel(%arg0: i32, %arg1: i32, %arg2: memref<1xf32, #tpu.memory_space<smem>>, %arg3: memref<16x128xf32, #tpu.memory_space<vmem>>, %arg4: memref<16x128xf32, #tpu.memory_space<vmem>>, %arg5: memref<24x128xf32, #tpu.memory_space<vmem>>, %arg6: memref<8x128xf32, #tpu.memory_space<vmem>>, %arg7: memref<8x128xf32, #tpu.memory_space<vmem>>, %arg8: memref<8x128xf32, #tpu.memory_space<vmem>>) attributes {dimension_semantics = [#tpu.dimension_semantics<parallel>, #tpu.dimension_semantics<arbitrary>], iteration_bounds = array<i64: 1, 1>, scalar_prefetch = 0 : i64, scratch_operands = 3 : i64, tpu.core_type = #tpu.core_type<tc>, window_params = [{transform_indices = @transform_0, window_bounds = array<i64: 1>}, {transform_indices = @transform_1, window_bounds = array<i64: 16, 128>}, {transform_indices = @transform_2, window_bounds = array<i64: 16, 128>}, {transform_indices = @transform_3, window_bounds = array<i64: 24, 128>}]} {
    %c0_i32 = arith.constant 0 : i32
    %0 = arith.cmpi eq, %arg1, %c0_i32 : i32
    %1 = arith.extui %0 : i1 to i32
    %c0_i32_0 = arith.constant 0 : i32
    %2 = arith.cmpi ne, %1, %c0_i32_0 : i32
    scf.if %2 {
      %cst = arith.constant 0.000000e+00 : f32
      %41 = vector.broadcast %cst : f32 to vector<8x128xf32>
      %c0_21 = arith.constant 0 : index
      %c0_22 = arith.constant 0 : index
      %42 = vector.load %arg6[%c0_21, %c0_22] : memref<8x128xf32, #tpu.memory_space<vmem>>, vector<8x128xf32>
      tpu.vector_store %arg6[%c0_21, %c0_22], %41 {strides = array<i32>} : memref<8x128xf32, #tpu.memory_space<vmem>>, vector<8x128xf32>,
      %cst_23 = arith.constant 0.000000e+00 : f32
      %43 = vector.broadcast %cst_23 : f32 to vector<8x128xf32>
      %c0_24 = arith.constant 0 : index
      %c0_25 = arith.constant 0 : index
      %44 = vector.load %arg7[%c0_24, %c0_25] : memref<8x128xf32, #tpu.memory_space<vmem>>, vector<8x128xf32>
      tpu.vector_store %arg7[%c0_24, %c0_25], %43 {strides = array<i32>} : memref<8x128xf32, #tpu.memory_space<vmem>>, vector<8x128xf32>,
      %cst_26 = arith.constant 0.000000e+00 : f32
      %45 = vector.broadcast %cst_26 : f32 to vector<8x128xf32>
      %c0_27 = arith.constant 0 : index
      %c0_28 = arith.constant 0 : index
      %46 = vector.load %arg8[%c0_27, %c0_28] : memref<8x128xf32, #tpu.memory_space<vmem>>, vector<8x128xf32>
      tpu.vector_store %arg8[%c0_27, %c0_28], %45 {strides = array<i32>} : memref<8x128xf32, #tpu.memory_space<vmem>>, vector<8x128xf32>,
    } else {
    }
    %c0 = arith.constant 0 : index
    %3 = memref.load %arg2[%c0] : memref<1xf32, #tpu.memory_space<smem>>
    %c0_1 = arith.constant 0 : index
    %c0_2 = arith.constant 0 : index
    %4 = vector.load %arg6[%c0_1, %c0_2] : memref<8x128xf32, #tpu.memory_space<vmem>>, vector<8x128xf32>
    %c0_3 = arith.constant 0 : index
    %c0_4 = arith.constant 0 : index
    %5 = vector.load %arg7[%c0_3, %c0_4] : memref<8x128xf32, #tpu.memory_space<vmem>>, vector<8x128xf32>
    %c0_5 = arith.constant 0 : index
    %c0_6 = arith.constant 0 : index
    %6 = vector.load %arg8[%c0_5, %c0_6] : memref<8x128xf32, #tpu.memory_space<vmem>>, vector<8x128xf32>
    %c0_i32_7 = arith.constant 0 : i32
    %c8_i32 = arith.constant 8 : i32
    %7 = arith.muli %c0_i32_7, %c8_i32 : i32
    %8 = tpu.assume_multiple %7, 8 : i32
    %9 = arith.index_cast %8 : i32 to index
    %c0_8 = arith.constant 0 : index
    %10 = vector.load %arg4[%9, %c0_8] : memref<16x128xf32, #tpu.memory_space<vmem>>, vector<8x128xf32>
    %11 = arith.index_cast %8 : i32 to index
    %c0_9 = arith.constant 0 : index
    %12 = vector.load %arg3[%11, %c0_9] : memref<16x128xf32, #tpu.memory_space<vmem>>, vector<8x128xf32>
    %13 = vector.broadcast %3 : f32 to vector<8x128xf32>
    %14 = arith.subf %10, %13 : vector<8x128xf32>
    %15 = arith.subf %10, %12 : vector<8x128xf32>
    %16 = arith.addf %4, %14 : vector<8x128xf32>
    %17 = arith.mulf %14, %14 : vector<8x128xf32>
    %18 = arith.addf %5, %17 : vector<8x128xf32>
    %19 = arith.mulf %15, %15 : vector<8x128xf32>
    %20 = arith.addf %6, %19 : vector<8x128xf32>
    %c1_i32 = arith.constant 1 : i32
    %c8_i32_10 = arith.constant 8 : i32
    %21 = arith.muli %c1_i32, %c8_i32_10 : i32
    %22 = tpu.assume_multiple %21, 8 : i32
    %23 = arith.index_cast %22 : i32 to index
    %c0_11 = arith.constant 0 : index
    %24 = vector.load %arg4[%23, %c0_11] : memref<16x128xf32, #tpu.memory_space<vmem>>, vector<8x128xf32>
    %25 = arith.index_cast %22 : i32 to index
    %c0_12 = arith.constant 0 : index
    %26 = vector.load %arg3[%25, %c0_12] : memref<16x128xf32, #tpu.memory_space<vmem>>, vector<8x128xf32>
    %27 = vector.broadcast %3 : f32 to vector<8x128xf32>
    %28 = arith.subf %24, %27 : vector<8x128xf32>
    %29 = arith.subf %24, %26 : vector<8x128xf32>
    %30 = arith.addf %16, %28 : vector<8x128xf32>
    %31 = arith.mulf %28, %28 : vector<8x128xf32>
    %32 = arith.addf %18, %31 : vector<8x128xf32>
    %33 = arith.mulf %29, %29 : vector<8x128xf32>
    %34 = arith.addf %20, %33 : vector<8x128xf32>
    %c2_i32 = arith.constant 2 : i32
    %c0_13 = arith.constant 0 : index
    %c0_14 = arith.constant 0 : index
    %35 = vector.load %arg6[%c0_13, %c0_14] : memref<8x128xf32, #tpu.memory_space<vmem>>, vector<8x128xf32>
    tpu.vector_store %arg6[%c0_13, %c0_14], %30 {strides = array<i32>} : memref<8x128xf32, #tpu.memory_space<vmem>>, vector<8x128xf32>,
    %c0_15 = arith.constant 0 : index
    %c0_16 = arith.constant 0 : index
    %36 = vector.load %arg7[%c0_15, %c0_16] : memref<8x128xf32, #tpu.memory_space<vmem>>, vector<8x128xf32>
    tpu.vector_store %arg7[%c0_15, %c0_16], %32 {strides = array<i32>} : memref<8x128xf32, #tpu.memory_space<vmem>>, vector<8x128xf32>,
    %c0_17 = arith.constant 0 : index
    %c0_18 = arith.constant 0 : index
    %37 = vector.load %arg8[%c0_17, %c0_18] : memref<8x128xf32, #tpu.memory_space<vmem>>, vector<8x128xf32>
    tpu.vector_store %arg8[%c0_17, %c0_18], %34 {strides = array<i32>} : memref<8x128xf32, #tpu.memory_space<vmem>>, vector<8x128xf32>,
    %c0_i32_19 = arith.constant 0 : i32
    %38 = arith.cmpi eq, %arg1, %c0_i32_19 : i32
    %39 = arith.extui %38 : i1 to i32
    %c0_i32_20 = arith.constant 0 : i32
    %40 = arith.cmpi ne, %39, %c0_i32_20 : i32
    scf.if %40 {
      %c0_21 = arith.constant 0 : index
      %c0_22 = arith.constant 0 : index
      %41 = vector.load %arg6[%c0_21, %c0_22] : memref<8x128xf32, #tpu.memory_space<vmem>>, vector<8x128xf32>
      %c0_23 = arith.constant 0 : index
      %c0_24 = arith.constant 0 : index
      %42 = vector.load %arg5[%c0_23, %c0_24] : memref<24x128xf32, #tpu.memory_space<vmem>>, vector<8x128xf32>
      tpu.vector_store %arg5[%c0_23, %c0_24], %41 {strides = array<i32>} : memref<24x128xf32, #tpu.memory_space<vmem>>, vector<8x128xf32>,
      %c0_25 = arith.constant 0 : index
      %c0_26 = arith.constant 0 : index
      %43 = vector.load %arg7[%c0_25, %c0_26] : memref<8x128xf32, #tpu.memory_space<vmem>>, vector<8x128xf32>
      %c8 = arith.constant 8 : index
      %c0_27 = arith.constant 0 : index
      %44 = vector.load %arg5[%c8, %c0_27] : memref<24x128xf32, #tpu.memory_space<vmem>>, vector<8x128xf32>
      tpu.vector_store %arg5[%c8, %c0_27], %43 {strides = array<i32>} : memref<24x128xf32, #tpu.memory_space<vmem>>, vector<8x128xf32>,
      %c0_28 = arith.constant 0 : index
      %c0_29 = arith.constant 0 : index
      %45 = vector.load %arg8[%c0_28, %c0_29] : memref<8x128xf32, #tpu.memory_space<vmem>>, vector<8x128xf32>
      %c16 = arith.constant 16 : index
      %c0_30 = arith.constant 0 : index
      %46 = vector.load %arg5[%c16, %c0_30] : memref<24x128xf32, #tpu.memory_space<vmem>>, vector<8x128xf32>
      tpu.vector_store %arg5[%c16, %c0_30], %45 {strides = array<i32>} : memref<24x128xf32, #tpu.memory_space<vmem>>, vector<8x128xf32>,
    } else {
    }
    return
  }
  func.func @transform_0(%arg0: i32, %arg1: i32) -> i32 {
    %c0_i32 = arith.constant 0 : i32
    %c0_i32_0 = arith.constant 0 : i32
    return %c0_i32 : i32
  }
  func.func @transform_1(%arg0: i32, %arg1: i32) -> (i32, i32) {
    %c1_i32 = arith.constant 1 : i32
    %0 = arith.muli %arg0, %c1_i32 : i32
    %1 = arith.addi %0, %arg1 : i32
    %c0_i32 = arith.constant 0 : i32
    %c0_i32_0 = arith.constant 0 : i32
    return %1, %c0_i32 : i32, i32
  }
  func.func @transform_2(%arg0: i32, %arg1: i32) -> (i32, i32) {
    %c1_i32 = arith.constant 1 : i32
    %0 = arith.muli %arg0, %c1_i32 : i32
    %1 = arith.addi %0, %arg1 : i32
    %c0_i32 = arith.constant 0 : i32
    %c0_i32_0 = arith.constant 0 : i32
    return %1, %c0_i32 : i32, i32
  }
  func.func @transform_3(%arg0: i32, %arg1: i32) -> (i32, i32) {
    %c0_i32 = arith.constant 0 : i32
    %c0_i32_0 = arith.constant 0 : i32
    return %arg0, %c0_i32 : i32, i32
  }
}

</mosaic_0001>

<llo_original>
// kernel: tpu_custom_call.1
$region0: #{tpu_custom_call.1}
  #allocation0 [shape = 'u32[]', space=smem, size = 0x4, offset = 0x4, fixed_abs, tag = 'smem constant byte address 0x4 - core index']
  #allocation1 [shape = 'u32[144,128]{1,0:T(1,128)}', space=vmem, size = 0x12000, scoped, tag = 'internal scratch']
  #allocation2 [shape = 'f32[8,128]{1,0:T(8,128)}', space=vmem, size = 0x1000, scoped, tag = 'scratch operand']
  #allocation3 [shape = 'f32[8,128]{1,0:T(8,128)}', space=vmem, size = 0x1000, scoped, tag = 'scratch operand']
  #allocation4 [shape = 'f32[8,128]{1,0:T(8,128)}', space=vmem, size = 0x1000, scoped, tag = 'scratch operand']
  #allocation5 [shape = 'f32[1]{0:T(128)S(6)}', space=smem, size = 0x200, scoped, tag = 'scoped memory for tpu_custom_call.1']
  %s0 = inlined_call_operand.<no memory space> [shape: f32[1], index: 0, kind: input, shape index: {}]
  %s1 = inlined_call_operand.hbm [shape: f32[16,128], index: 1, kind: input, shape index: {}]
  %s2 = inlined_call_operand.hbm [shape: f32[16,128], index: 2, kind: input, shape index: {}]
  %s3 = inlined_call_operand.hbm [shape: f32[24,128], index: 3, kind: output, shape index: {}]
  %s4 = sld [smem:[#allocation0]]
  $region38: #{tpu_custom_call.1} parent=0
    _
  %s6 = ssub.s32 1, %s4
  %s7 = scalar_select 0, %s6, %s4
  %8 = sst [smem:[#allocation5]] %s0
  $region1: #{tpu_custom_call.1} parent=0
    #allocation6 [shape = 'u8[8192]{0}', space=vmem, size = 0x2000, scoped, tag = 'input window, operand 1, single buffered']
    #allocation7 [shape = 's32[1]{0}', space=sflag, size = 0x4, scoped, tag = 'scoped memory for tpu_custom_call.1']
    #allocation8 [shape = 's32[1]{0}', space=sflag, size = 0x4, scoped, tag = 'scoped memory for tpu_custom_call.1']
    #allocation9 [shape = 'u8[8192]{0}', space=vmem, size = 0x2000, scoped, tag = 'input window, operand 2, single buffered']
    #allocation10 [shape = 's32[1]{0}', space=sflag, size = 0x4, scoped, tag = 'scoped memory for tpu_custom_call.1']
    #allocation11 [shape = 'u8[12288]{0}', space=vmem, size = 0x3000, scoped, tag = 'output window, operand 0, single buffered']
    %9 = vsyncpa [#allocation7], 0
    %10 = vsyncpa [#allocation10], 0
    %11 = vsyncpa [#allocation8], 0
    // Predicated region
    $region2: #{tpu_custom_call.1} parent=1 // pred_check
      _
    $region3: #{tpu_custom_call.1} parent=1 // pred_check_branch
      %13 = sbr.rel (0) target = $region5
    $region4: #{tpu_custom_call.1} parent=1 // pred_region
      _
    $region5: #{tpu_custom_call.1} parent=1 // pred_fallthru
      _
    // Predicated region
    $region6: #{tpu_custom_call.1} parent=1 // pred_check
      _
    $region7: #{tpu_custom_call.1} parent=1 // pred_check_branch
      %15 = sbr.rel (0) target = $region9
    $region8: #{tpu_custom_call.1} parent=1 // pred_region
      %s16 = sadd.s32 0, 0
      %s17 = smul.u32 2, %s16
      %s19 = ssub.s32 256, 256
      %20 = vsyncadd [#allocation7], %s19
      %s21 = smul.addr %s17, 128
      %s22 = scalar_lea.hbm %s1, %s21
      %s23 = sshll.u32 [#allocation6], 4
      %s24 = int_to_ptr.vmem [resolvable:$true] %s23
      %29 = dma.hbm_to_vmem [thread:$0]  %s22, 256, %s24, [#allocation7], 128, 128, 8
    $region9: #{tpu_custom_call.1} parent=1 // pred_fallthru
      _
    // Predicated region
    $region10: #{tpu_custom_call.1} parent=1 // pred_check
      _
    $region11: #{tpu_custom_call.1} parent=1 // pred_check_branch
      %31 = sbr.rel (0) target = $region13
    $region12: #{tpu_custom_call.1} parent=1 // pred_region
      %s32 = sadd.s32 0, 0
      %s33 = smul.u32 2, %s32
      %s35 = ssub.s32 256, 256
      %36 = vsyncadd [#allocation10], %s35
      %s37 = smul.addr %s33, 128
      %s38 = scalar_lea.hbm %s2, %s37
      %s39 = sshll.u32 [#allocation9], 4
      %s40 = int_to_ptr.vmem [resolvable:$true] %s39
      %45 = dma.hbm_to_vmem [thread:$0]  %s38, 256, %s40, [#allocation10], 128, 128, 8
    $region13: #{tpu_custom_call.1} parent=1 // pred_fallthru
      _
    // Predicated region
    $region14: #{tpu_custom_call.1} parent=1 // pred_check
      _
    $region15: #{tpu_custom_call.1} parent=1 // pred_check_branch
      %47 = sbr.rel (0) target = $region17
    $region16: #{tpu_custom_call.1} parent=1 // pred_region
      %48 = dma.done [#allocation7], 256
    $region17: #{tpu_custom_call.1} parent=1 // pred_fallthru
      _
    // Predicated region
    $region18: #{tpu_custom_call.1} parent=1 // pred_check
      _
    $region19: #{tpu_custom_call.1} parent=1 // pred_check_branch
      %50 = sbr.rel (0) target = $region21
    $region20: #{tpu_custom_call.1} parent=1 // pred_region
      %51 = dma.done [#allocation10], 256
    $region21: #{tpu_custom_call.1} parent=1 // pred_fallthru
      _
    %s52 = sadd.s32 0, 0
    %s53 = smul.u32 2, %s52
    %s54 = sadd.s32 0, 0
    %s55 = smul.u32 2, %s54
    %p56 = scmp.eq.s32.totalorder 0, 0
    // Predicated region
    $region22: #{tpu_custom_call.1} parent=1 // pred_check
      %p57 = pneg %p56
    $region23: #{tpu_custom_call.1} parent=1 // pred_check_branch
      %59 = sbr.rel (%p57) target = $region25
    $region24: #{tpu_custom_call.1} parent=1 // pred_region
      %60 = vst [vmem:[#allocation2] sm:$0xff] 0.0
      %61 = vst [vmem:[#allocation3] sm:$0xff] 0.0
      %62 = vst [vmem:[#allocation4] sm:$0xff] 0.0
    $region25: #{tpu_custom_call.1} parent=1 // pred_fallthru
      _
    %s63 = sld [smem:[#allocation5]]
    %v64 = vld [vmem:[#allocation2] sm:$0xff]
    %v65 = vld [vmem:[#allocation3] sm:$0xff]
    %v66 = vld [vmem:[#allocation4] sm:$0xff]
    %v67 = vld [vmem:[#allocation9] sm:$0xff]
    %v68 = vld [vmem:[#allocation6] sm:$0xff]
    %v69 = vstv %s63
    %v70 = vsub.f32 %v67, %v69
    %v71 = vsub.f32 %v67, %v68
    %v72 = vadd.f32 %v64, %v70
    %v73 = vmul.f32 %v70, %v70
    %v74 = vadd.f32 %v65, %v73
    %v75 = vmul.f32 %v71, %v71
    %v76 = vadd.f32 %v66, %v75
    %s77 = scalar_lea.vmem [#allocation9], 8
    %v78 = vld [vmem:[%s77] sm:$0xff]
    %s79 = scalar_lea.vmem [#allocation6], 8
    %v80 = vld [vmem:[%s79] sm:$0xff]
    %v81 = vsub.f32 %v78, %v69
    %v82 = vsub.f32 %v78, %v80
    %v83 = vadd.f32 %v72, %v81
    %v84 = vmul.f32 %v81, %v81
    %v85 = vadd.f32 %v74, %v84
    %v86 = vmul.f32 %v82, %v82
    %v87 = vadd.f32 %v76, %v86
    %88 = vst [vmem:[#allocation2] sm:$0xff] %v83
    %89 = vst [vmem:[#allocation3] sm:$0xff] %v85
    %90 = vst [vmem:[#allocation4] sm:$0xff] %v87
    // Predicated region
    $region26: #{tpu_custom_call.1} parent=1 // pred_check
      %p91 = pneg %p56
    $region27: #{tpu_custom_call.1} parent=1 // pred_check_branch
      %93 = sbr.rel (%p91) target = $region29
    $region28: #{tpu_custom_call.1} parent=1 // pred_region
      %v94 = vld [vmem:[#allocation2] sm:$0xff]
      %95 = vst [vmem:[#allocation11] sm:$0xff] %v94
      %v96 = vld [vmem:[#allocation3] sm:$0xff]
      %97 = vst [vmem:[#allocation11 + $0x8] sm:$0xff] %v96
      %v98 = vld [vmem:[#allocation4] sm:$0xff]
      %99 = vst [vmem:[#allocation11 + $0x10] sm:$0xff] %v98
    $region29: #{tpu_custom_call.1} parent=1 // pred_fallthru
      _
    // Predicated region
    $region30: #{tpu_custom_call.1} parent=1 // pred_check
      _
    $region31: #{tpu_custom_call.1} parent=1 // pred_check_branch
      %101 = sbr.rel (0) target = $region33
    $region32: #{tpu_custom_call.1} parent=1 // pred_region
      %s103 = ssub.s32 384, 384
      %104 = vsyncadd [#allocation8], %s103
      %s105 = sshll.u32 [#allocation11], 4
      %s106 = int_to_ptr.vmem [resolvable:$true] %s105
      %111 = dma.vmem_to_hbm [thread:$0]  %s106, 384, %s3, [#allocation8], 128, 128, 8
    $region33: #{tpu_custom_call.1} parent=1 // pred_fallthru
      _
    // Predicated region
    $region34: #{tpu_custom_call.1} parent=1 // pred_check
      _
    $region35: #{tpu_custom_call.1} parent=1 // pred_check_branch
      %113 = sbr.rel (0) target = $region37
    $region36: #{tpu_custom_call.1} parent=1 // pred_region
      %114 = dma.done [#allocation8], 384
    $region37: #{tpu_custom_call.1} parent=1 // pred_fallthru
      _
    %115 = vsyncpa [#allocation7], 1
    %116 = vsyncpa [#allocation10], 1
    %117 = vsyncpa [#allocation8], 1

</llo_original>
